<compile_context>
chip_gen: v5e
topology: v5e:2x2
jax: 0.10.0
libtpu: 0.0.40
codegen_flags: <defaults>
</compile_context>

<pallas_src>
import functools

import jax
import jax.numpy as jnp
from jax import lax
from jax.experimental import pallas as pl
from jax.experimental.pallas import tpu as pltpu

_CHUNK = 128                     # one vreg lane group
_MAX_TB = 64                     # cap on sublane rows per block (bounds vreg pressure)
_MAX_BLOCK_IN_BYTES = 1 << 20    # ~1 MiB input tile -> ~4-5 MiB pipelined VMEM footprint
_MAX_FULL_ROW = 8192             # take the whole row as a single length block up to this length
_TILED_TL = 2048                 # length tile when the row is tiled (multiple of 128)


def _scan_chunk(xc, lane):
    """Inclusive product scan along the lane axis of a (tb, 128) f32 tile.

    `lane` is the hoisted (tb, 128) int32 lane iota, computed once per kernel
    invocation and reused for every chunk (avoids re-materializing
    broadcast_in_dim per chunk)."""
    y = xc
    off = 1
    while off < _CHUNK:
        shifted = pltpu.roll(y, shift=off, axis=1)     # XLU; wrap-around masked below
        y = y * jnp.where(lane >= off, shifted, jnp.float32(1.0))
        off *= 2
    return y


def _cumprod_kernel(x_ref, o_ref, carry_ref, *, L, tl, ragged):
    j = pl.program_id(1)

    # Reset the running product at the start of each row of length blocks.
    @pl.when(j == 0)
    def _():
        carry_ref[...] = jnp.ones_like(carry_ref)

    tb = x_ref.shape[0]
    nc, rem = divmod(tl, _CHUNK)

    # Hoisted once per block; reused by every chunk and the tail.
    lane = lax.broadcasted_iota(jnp.int32, (tb, _CHUNK), 1)

    carry0 = carry_ref[...]                            # (tb, 128), row-constant

    def chunk_body(c, carry):
        start = pl.multiple_of(c * _CHUNK, _CHUNK)
        xc = x_ref[:, pl.ds(start, _CHUNK)].astype(jnp.float32)
        if ragged:
            # The last length block may extend past L; replace out-of-range
            # lanes with the cumprod identity so scan/carry stay well defined.
            col = j * tl + start + lane
            xc = jnp.where(col < L, xc, jnp.float32(1.0))
        yc = _scan_chunk(xc, lane) * carry
        o_ref[:, pl.ds(start, _CHUNK)] = yc.astype(o_ref.dtype)
        return jnp.broadcast_to(yc[:, _CHUNK - 1:_CHUNK], (tb, _CHUNK))

    # fori_loop bounds live ranges of the per-chunk temporaries while keeping a
    # visible, alignable loop for the scheduler.
    carry = lax.fori_loop(0, nc, chunk_body, carry0, unroll=2) if nc > 0 else carry0

    if rem:
        # Tail chunk (< 128 lanes): only reached when the whole row is one
        # block (tl == L). Pad with ones (the cumprod identity) so the doubling
        # scan still runs on a full 128-lane vreg group.
        start = nc * _CHUNK
        xc = x_ref[:, start:start + rem].astype(jnp.float32)
        ones = jnp.ones((tb, _CHUNK - rem), jnp.float32)
        yw = _scan_chunk(jnp.concatenate([xc, ones], axis=1), lane) * carry
        o_ref[:, start:start + rem] = yw[:, :rem].astype(o_ref.dtype)
        carry = jnp.broadcast_to(yw[:, rem - 1:rem], (tb, _CHUNK))

    carry_ref[...] = carry


def _pick_tiles(B, L, itemsize):
    """Pick (batch_tile, length_tile)."""
    # Length (lane) tile: whole row when modest (tail handled in-kernel),
    # otherwise a fixed multiple of 128 (ragged last block masked in-kernel).
    tl = L if L <= _MAX_FULL_ROW else _TILED_TL

    if B % 8 != 0:
        # Block-spec rule: sublane dim must be a multiple of 8 or the full batch.
        tb = B
        max_tl = max(_CHUNK, (4 * _MAX_BLOCK_IN_BYTES) // max(1, tb * itemsize))
        if tl > max_tl and L > _CHUNK:
            tl = max(_CHUNK, (max_tl // _CHUNK) * _CHUNK)
    else:
        cap_vmem = max(8, ((_MAX_BLOCK_IN_BYTES // max(1, tl * itemsize)) // 8) * 8)
        target = max(8, ((B // 4) // 8) * 8)   # aim for >= 4 parallel batch blocks
        tb = max(8, min(_MAX_TB, cap_vmem, target, B))
    return tb, tl


def _cumprod_dim1_2d(x, *, block_b=None, block_l=None):
    """cumprod along axis=1 of a 2D array (batch, length)."""
    assert x.ndim == 2, "expected (batch, length)"
    B, L = x.shape

    if not jnp.issubdtype(x.dtype, jnp.floating):
        # TODO(synk): integer cumprod semantics not implemented in-kernel.
        return jnp.cumprod(x, axis=1)

    itemsize = jnp.dtype(x.dtype).itemsize
    tb, tl = _pick_tiles(B, L, itemsize)
    if block_l is not None:
        tl = block_l
    if block_b is not None:
        tb = block_b
    assert tl == L or tl % _CHUNK == 0, "length tile must be a multiple of 128 or the full row"
    assert tb == B or tb % 8 == 0, "batch tile must be a multiple of 8 or the full batch"

    ragged = (tl != L) and (L % tl != 0)
    grid = (pl.cdiv(B, tb), pl.cdiv(L, tl))

    kernel = functools.partial(_cumprod_kernel, L=L, tl=tl, ragged=ragged)

    # Set an explicit VMEM limit only when the pipelined footprint might exceed
    # the default scoped limit (stay well under v7x's 64 MiB physical VMEM).
    block_bytes = tb * tl * itemsize
    vmem_need = 4 * block_bytes + tb * _CHUNK * 4 + (1 << 20)
    compiler_kwargs = dict(dimension_semantics=("parallel", "arbitrary"))
    if vmem_need > 12 * 1024 * 1024:
        compiler_kwargs["vmem_limit_bytes"] = int(min(2 * vmem_need, 48 * 1024 * 1024))

    out = pl.pallas_call(
        kernel,
        out_shape=jax.ShapeDtypeStruct((B, L), x.dtype),
        grid_spec=pltpu.PrefetchScalarGridSpec(
            num_scalar_prefetch=0,
            grid=grid,
            in_specs=[pl.BlockSpec((tb, tl), lambda i, j: (i, j))],
            out_specs=pl.BlockSpec((tb, tl), lambda i, j: (i, j)),
            scratch_shapes=[pltpu.VMEM((tb, _CHUNK), jnp.float32)],
        ),
        compiler_params=pltpu.CompilerParams(**compiler_kwargs),
        cost_estimate=pl.CostEstimate(
            flops=8 * B * L,
            transcendentals=0,
            bytes_accessed=2 * B * L * itemsize,
        ),
    )(x)
    return out


def cumprod(x, dim=1):
    """torch.cumprod(x, dim=dim) equivalent."""
    x = jnp.asarray(x)
    if x.ndim == 2 and dim in (1, -1):
        return _cumprod_dim1_2d(x)
    # General case: move the scan axis last, flatten leading dims, run the 2D
    # kernel, and restore the original layout.
    xm = jnp.moveaxis(x, dim, -1)
    lead, L = xm.shape[:-1], xm.shape[-1]
    y = _cumprod_dim1_2d(xm.reshape(-1, L)).reshape(*lead, L)
    return jnp.moveaxis(y, -1, dim)


if __name__ == "__main__":
    key = jax.random.PRNGKey(0)

    # Primary small shape consistent with the module: (batch, length), dim=1.
    B, L = 8, 256
    x = jax.random.uniform(key, (B, L), dtype=jnp.float32, minval=0.5, maxval=1.5)
    out = jax.block_until_ready(cumprod(x, dim=1))
    ref = jnp.cumprod(x, axis=1)
    assert out.shape == ref.shape and out.dtype == ref.dtype
    assert jnp.allclose(out, ref, rtol=1e-5, atol=1e-5), "mismatch vs jnp.cumprod"

    # Tiled length path: carry across length blocks, ragged last block handled
    # in-kernel (no wrapper pad/slice), >= 2 parallel batch blocks.
    x2 = jax.random.uniform(jax.random.fold_in(key, 1), (16, 1300),
                            dtype=jnp.float32, minval=0.9, maxval=1.1)
    out2 = jax.block_until_ready(_cumprod_dim1_2d(x2, block_l=512, block_b=8))
    assert jnp.allclose(out2, jnp.cumprod(x2, axis=1), rtol=1e-4, atol=1e-6)

    # Single-block row with an in-kernel ones-padded tail chunk (L % 128 != 0).
    x3 = jax.random.uniform(jax.random.fold_in(key, 2), (8, 200),
                            dtype=jnp.float32, minval=0.5, maxval=1.5)
    out3 = jax.block_until_ready(cumprod(x3, dim=1))
    assert jnp.allclose(out3, jnp.cumprod(x3, axis=1), rtol=1e-5, atol=1e-5)

    print("KERNEL_OK")
</pallas_src>

<mosaic_0001>
module attributes {stable_mosaic.version = 11 : i64} {
  func.func @_cumprod_kernel(%arg0: i32, %arg1: i32, %arg2: memref<8x256xf32, #tpu.memory_space<vmem>>, %arg3: memref<8x256xf32, #tpu.memory_space<vmem>>, %arg4: memref<8x128xf32, #tpu.memory_space<vmem>>) attributes {dimension_semantics = [#tpu.dimension_semantics<parallel>, #tpu.dimension_semantics<arbitrary>], iteration_bounds = array<i64: 1, 1>, scalar_prefetch = 0 : i64, scratch_operands = 1 : i64, tpu.core_type = #tpu.core_type<tc>, window_params = [{transform_indices = @transform_0, window_bounds = array<i64: 8, 256>}, {transform_indices = @transform_1, window_bounds = array<i64: 8, 256>}]} {
    %c0_i32 = arith.constant 0 : i32
    %0 = arith.cmpi eq, %arg1, %c0_i32 : i32
    %1 = arith.extui %0 : i1 to i32
    %c0_i32_0 = arith.constant 0 : i32
    %2 = arith.cmpi ne, %1, %c0_i32_0 : i32
    scf.if %2 {
      %cst_46 = arith.constant 1.000000e+00 : f32
      %110 = vector.broadcast %cst_46 : f32 to vector<8x128xf32>
      %c0_47 = arith.constant 0 : index
      %c0_48 = arith.constant 0 : index
      %111 = vector.load %arg4[%c0_47, %c0_48] : memref<8x128xf32, #tpu.memory_space<vmem>>, vector<8x128xf32>
      tpu.vector_store %arg4[%c0_47, %c0_48], %110 {strides = array<i32>} : memref<8x128xf32, #tpu.memory_space<vmem>>, vector<8x128xf32>,
    } else {
    }
    %3 = tpu.iota {dimensions = array<i32: 1>} : vector<8x128xi32>
    %c0 = arith.constant 0 : index
    %c0_1 = arith.constant 0 : index
    %4 = vector.load %arg4[%c0, %c0_1] : memref<8x128xf32, #tpu.memory_space<vmem>>, vector<8x128xf32>
    %c0_i32_2 = arith.constant 0 : i32
    %c128_i32 = arith.constant 128 : i32
    %5 = arith.muli %c0_i32_2, %c128_i32 : i32
    %6 = tpu.assume_multiple %5, 128 : i32
    %c0_3 = arith.constant 0 : index
    %7 = arith.index_cast %6 : i32 to index
    %8 = vector.load %arg2[%c0_3, %7] : memref<8x256xf32, #tpu.memory_space<vmem>>, vector<8x128xf32>
    %c1_i32 = arith.constant 1 : i32
    %9 = tpu.dynamic_rotate %8 by %c1_i32 dim 1 : vector<8x128xf32>, i32 -> vector<8x128xf32>
    %c1_i32_4 = arith.constant 1 : i32
    %10 = vector.broadcast %c1_i32_4 : i32 to vector<8x128xi32>
    %11 = arith.cmpi sge, %3, %10 : vector<8x128xi32>
    %cst = arith.constant 1.000000e+00 : f32
    %12 = vector.broadcast %cst : f32 to vector<8x128xf32>
    %13 = arith.select %11, %9, %12 : vector<8x128xi1>, vector<8x128xf32>
    %14 = arith.mulf %8, %13 : vector<8x128xf32>
    %c2_i32 = arith.constant 2 : i32
    %15 = tpu.dynamic_rotate %14 by %c2_i32 dim 1 : vector<8x128xf32>, i32 -> vector<8x128xf32>
    %c2_i32_5 = arith.constant 2 : i32
    %16 = vector.broadcast %c2_i32_5 : i32 to vector<8x128xi32>
    %17 = arith.cmpi sge, %3, %16 : vector<8x128xi32>
    %cst_6 = arith.constant 1.000000e+00 : f32
    %18 = vector.broadcast %cst_6 : f32 to vector<8x128xf32>
    %19 = arith.select %17, %15, %18 : vector<8x128xi1>, vector<8x128xf32>
    %20 = arith.mulf %14, %19 : vector<8x128xf32>
    %c4_i32 = arith.constant 4 : i32
    %21 = tpu.dynamic_rotate %20 by %c4_i32 dim 1 : vector<8x128xf32>, i32 -> vector<8x128xf32>
    %c4_i32_7 = arith.constant 4 : i32
    %22 = vector.broadcast %c4_i32_7 : i32 to vector<8x128xi32>
    %23 = arith.cmpi sge, %3, %22 : vector<8x128xi32>
    %cst_8 = arith.constant 1.000000e+00 : f32
    %24 = vector.broadcast %cst_8 : f32 to vector<8x128xf32>
    %25 = arith.select %23, %21, %24 : vector<8x128xi1>, vector<8x128xf32>
    %26 = arith.mulf %20, %25 : vector<8x128xf32>
    %c8_i32 = arith.constant 8 : i32
    %27 = tpu.dynamic_rotate %26 by %c8_i32 dim 1 : vector<8x128xf32>, i32 -> vector<8x128xf32>
    %c8_i32_9 = arith.constant 8 : i32
    %28 = vector.broadcast %c8_i32_9 : i32 to vector<8x128xi32>
    %29 = arith.cmpi sge, %3, %28 : vector<8x128xi32>
    %cst_10 = arith.constant 1.000000e+00 : f32
    %30 = vector.broadcast %cst_10 : f32 to vector<8x128xf32>
    %31 = arith.select %29, %27, %30 : vector<8x128xi1>, vector<8x128xf32>
    %32 = arith.mulf %26, %31 : vector<8x128xf32>
    %c16_i32 = arith.constant 16 : i32
    %33 = tpu.dynamic_rotate %32 by %c16_i32 dim 1 : vector<8x128xf32>, i32 -> vector<8x128xf32>
    %c16_i32_11 = arith.constant 16 : i32
    %34 = vector.broadcast %c16_i32_11 : i32 to vector<8x128xi32>
    %35 = arith.cmpi sge, %3, %34 : vector<8x128xi32>
    %cst_12 = arith.constant 1.000000e+00 : f32
    %36 = vector.broadcast %cst_12 : f32 to vector<8x128xf32>
    %37 = arith.select %35, %33, %36 : vector<8x128xi1>, vector<8x128xf32>
    %38 = arith.mulf %32, %37 : vector<8x128xf32>
    %c32_i32 = arith.constant 32 : i32
    %39 = tpu.dynamic_rotate %38 by %c32_i32 dim 1 : vector<8x128xf32>, i32 -> vector<8x128xf32>
    %c32_i32_13 = arith.constant 32 : i32
    %40 = vector.broadcast %c32_i32_13 : i32 to vector<8x128xi32>
    %41 = arith.cmpi sge, %3, %40 : vector<8x128xi32>
    %cst_14 = arith.constant 1.000000e+00 : f32
    %42 = vector.broadcast %cst_14 : f32 to vector<8x128xf32>
    %43 = arith.select %41, %39, %42 : vector<8x128xi1>, vector<8x128xf32>
    %44 = arith.mulf %38, %43 : vector<8x128xf32>
    %c64_i32 = arith.constant 64 : i32
    %45 = tpu.dynamic_rotate %44 by %c64_i32 dim 1 : vector<8x128xf32>, i32 -> vector<8x128xf32>
    %c64_i32_15 = arith.constant 64 : i32
    %46 = vector.broadcast %c64_i32_15 : i32 to vector<8x128xi32>
    %47 = arith.cmpi sge, %3, %46 : vector<8x128xi32>
    %cst_16 = arith.constant 1.000000e+00 : f32
    %48 = vector.broadcast %cst_16 : f32 to vector<8x128xf32>
    %49 = arith.select %47, %45, %48 : vector<8x128xi1>, vector<8x128xf32>
    %50 = arith.mulf %44, %49 : vector<8x128xf32>
    %51 = arith.mulf %50, %4 : vector<8x128xf32>
    %c0_17 = arith.constant 0 : index
    %52 = arith.index_cast %6 : i32 to index
    %53 = vector.load %arg3[%c0_17, %52] : memref<8x256xf32, #tpu.memory_space<vmem>>, vector<8x128xf32>
    tpu.vector_store %arg3[%c0_17, %52], %51 {strides = array<i32>} : memref<8x256xf32, #tpu.memory_space<vmem>>, vector<8x128xf32>,
    %54 = vector.extract_strided_slice %51 {offsets = [0, 127], sizes = [8, 1], strides = [1, 1]} : vector<8x128xf32> to vector<8x1xf32>
    %55 = vector.shape_cast %54 : vector<8x1xf32> to vector<8x1xf32>
    %56 = vector.broadcast %55 : vector<8x1xf32> to vector<8x128xf32>
    %c1_i32_18 = arith.constant 1 : i32
    %c128_i32_19 = arith.constant 128 : i32
    %57 = arith.muli %c1_i32_18, %c128_i32_19 : i32
    %58 = tpu.assume_multiple %57, 128 : i32
    %c0_20 = arith.constant 0 : index
    %59 = arith.index_cast %58 : i32 to index
    %60 = vector.load %arg2[%c0_20, %59] : memref<8x256xf32, #tpu.memory_space<vmem>>, vector<8x128xf32>
    %c1_i32_21 = arith.constant 1 : i32
    %61 = tpu.dynamic_rotate %60 by %c1_i32_21 dim 1 : vector<8x128xf32>, i32 -> vector<8x128xf32>
    %c1_i32_22 = arith.constant 1 : i32
    %62 = vector.broadcast %c1_i32_22 : i32 to vector<8x128xi32>
    %63 = arith.cmpi sge, %3, %62 : vector<8x128xi32>
    %cst_23 = arith.constant 1.000000e+00 : f32
    %64 = vector.broadcast %cst_23 : f32 to vector<8x128xf32>
    %65 = arith.select %63, %61, %64 : vector<8x128xi1>, vector<8x128xf32>
    %66 = arith.mulf %60, %65 : vector<8x128xf32>
    %c2_i32_24 = arith.constant 2 : i32
    %67 = tpu.dynamic_rotate %66 by %c2_i32_24 dim 1 : vector<8x128xf32>, i32 -> vector<8x128xf32>
    %c2_i32_25 = arith.constant 2 : i32
    %68 = vector.broadcast %c2_i32_25 : i32 to vector<8x128xi32>
    %69 = arith.cmpi sge, %3, %68 : vector<8x128xi32>
    %cst_26 = arith.constant 1.000000e+00 : f32
    %70 = vector.broadcast %cst_26 : f32 to vector<8x128xf32>
    %71 = arith.select %69, %67, %70 : vector<8x128xi1>, vector<8x128xf32>
    %72 = arith.mulf %66, %71 : vector<8x128xf32>
    %c4_i32_27 = arith.constant 4 : i32
    %73 = tpu.dynamic_rotate %72 by %c4_i32_27 dim 1 : vector<8x128xf32>, i32 -> vector<8x128xf32>
    %c4_i32_28 = arith.constant 4 : i32
    %74 = vector.broadcast %c4_i32_28 : i32 to vector<8x128xi32>
    %75 = arith.cmpi sge, %3, %74 : vector<8x128xi32>
    %cst_29 = arith.constant 1.000000e+00 : f32
    %76 = vector.broadcast %cst_29 : f32 to vector<8x128xf32>
    %77 = arith.select %75, %73, %76 : vector<8x128xi1>, vector<8x128xf32>
    %78 = arith.mulf %72, %77 : vector<8x128xf32>
    %c8_i32_30 = arith.constant 8 : i32
    %79 = tpu.dynamic_rotate %78 by %c8_i32_30 dim 1 : vector<8x128xf32>, i32 -> vector<8x128xf32>
    %c8_i32_31 = arith.constant 8 : i32
    %80 = vector.broadcast %c8_i32_31 : i32 to vector<8x128xi32>
    %81 = arith.cmpi sge, %3, %80 : vector<8x128xi32>
    %cst_32 = arith.constant 1.000000e+00 : f32
    %82 = vector.broadcast %cst_32 : f32 to vector<8x128xf32>
    %83 = arith.select %81, %79, %82 : vector<8x128xi1>, vector<8x128xf32>
    %84 = arith.mulf %78, %83 : vector<8x128xf32>
    %c16_i32_33 = arith.constant 16 : i32
    %85 = tpu.dynamic_rotate %84 by %c16_i32_33 dim 1 : vector<8x128xf32>, i32 -> vector<8x128xf32>
    %c16_i32_34 = arith.constant 16 : i32
    %86 = vector.broadcast %c16_i32_34 : i32 to vector<8x128xi32>
    %87 = arith.cmpi sge, %3, %86 : vector<8x128xi32>
    %cst_35 = arith.constant 1.000000e+00 : f32
    %88 = vector.broadcast %cst_35 : f32 to vector<8x128xf32>
    %89 = arith.select %87, %85, %88 : vector<8x128xi1>, vector<8x128xf32>
    %90 = arith.mulf %84, %89 : vector<8x128xf32>
    %c32_i32_36 = arith.constant 32 : i32
    %91 = tpu.dynamic_rotate %90 by %c32_i32_36 dim 1 : vector<8x128xf32>, i32 -> vector<8x128xf32>
    %c32_i32_37 = arith.constant 32 : i32
    %92 = vector.broadcast %c32_i32_37 : i32 to vector<8x128xi32>
    %93 = arith.cmpi sge, %3, %92 : vector<8x128xi32>
    %cst_38 = arith.constant 1.000000e+00 : f32
    %94 = vector.broadcast %cst_38 : f32 to vector<8x128xf32>
    %95 = arith.select %93, %91, %94 : vector<8x128xi1>, vector<8x128xf32>
    %96 = arith.mulf %90, %95 : vector<8x128xf32>
    %c64_i32_39 = arith.constant 64 : i32
    %97 = tpu.dynamic_rotate %96 by %c64_i32_39 dim 1 : vector<8x128xf32>, i32 -> vector<8x128xf32>
    %c64_i32_40 = arith.constant 64 : i32
    %98 = vector.broadcast %c64_i32_40 : i32 to vector<8x128xi32>
    %99 = arith.cmpi sge, %3, %98 : vector<8x128xi32>
    %cst_41 = arith.constant 1.000000e+00 : f32
    %100 = vector.broadcast %cst_41 : f32 to vector<8x128xf32>
    %101 = arith.select %99, %97, %100 : vector<8x128xi1>, vector<8x128xf32>
    %102 = arith.mulf %96, %101 : vector<8x128xf32>
    %103 = arith.mulf %102, %56 : vector<8x128xf32>
    %c0_42 = arith.constant 0 : index
    %104 = arith.index_cast %58 : i32 to index
    %105 = vector.load %arg3[%c0_42, %104] : memref<8x256xf32, #tpu.memory_space<vmem>>, vector<8x128xf32>
    tpu.vector_store %arg3[%c0_42, %104], %103 {strides = array<i32>} : memref<8x256xf32, #tpu.memory_space<vmem>>, vector<8x128xf32>,
    %106 = vector.extract_strided_slice %103 {offsets = [0, 127], sizes = [8, 1], strides = [1, 1]} : vector<8x128xf32> to vector<8x1xf32>
    %107 = vector.shape_cast %106 : vector<8x1xf32> to vector<8x1xf32>
    %108 = vector.broadcast %107 : vector<8x1xf32> to vector<8x128xf32>
    %c2_i32_43 = arith.constant 2 : i32
    %c0_44 = arith.constant 0 : index
    %c0_45 = arith.constant 0 : index
    %109 = vector.load %arg4[%c0_44, %c0_45] : memref<8x128xf32, #tpu.memory_space<vmem>>, vector<8x128xf32>
    tpu.vector_store %arg4[%c0_44, %c0_45], %108 {strides = array<i32>} : memref<8x128xf32, #tpu.memory_space<vmem>>, vector<8x128xf32>,
    return
  }
  func.func @transform_0(%arg0: i32, %arg1: i32) -> (i32, i32) {
    %c0_i32 = arith.constant 0 : i32
    return %arg0, %arg1 : i32, i32
  }
  func.func @transform_1(%arg0: i32, %arg1: i32) -> (i32, i32) {
    %c0_i32 = arith.constant 0 : i32
    return %arg0, %arg1 : i32, i32
  }
}

</mosaic_0001>

<llo_original>
// kernel: tpu_custom_call.1
$region0: #{tpu_custom_call.1}
  #allocation0 [shape = 'u32[]', space=smem, size = 0x4, offset = 0x4, fixed_abs, tag = 'smem constant byte address 0x4 - core index']
  #allocation1 [shape = 'u32[72,128]{1,0:T(1,128)}', space=vmem, size = 0x9000, scoped, tag = 'internal scratch']
  #allocation2 [shape = 'f32[8,128]{1,0:T(8,128)}', space=vmem, size = 0x1000, scoped, tag = 'scratch operand']
  %s0 = inlined_call_operand.hbm [shape: f32[8,256], index: 0, kind: input, shape index: {}]
  %s1 = inlined_call_operand.hbm [shape: f32[8,256], index: 1, kind: output, shape index: {}]
  %s2 = sld [smem:[#allocation0]]
  $region22: #{tpu_custom_call.1} parent=0
    _
  %s4 = ssub.s32 1, %s2
  %s5 = scalar_select 0, %s4, %s2
  $region1: #{tpu_custom_call.1} parent=0
    #allocation3 [shape = 'u8[8192]{0}', space=vmem, size = 0x2000, scoped, tag = 'input window, operand 0, single buffered']
    #allocation4 [shape = 's32[1]{0}', space=sflag, size = 0x4, scoped, tag = 'scoped memory for tpu_custom_call.1']
    #allocation5 [shape = 's32[1]{0}', space=sflag, size = 0x4, scoped, tag = 'scoped memory for tpu_custom_call.1']
    #allocation6 [shape = 'u8[8192]{0}', space=vmem, size = 0x2000, scoped, tag = 'output window, operand 0, single buffered']
    %6 = vsyncpa [#allocation4], 0
    %7 = vsyncpa [#allocation5], 0
    // Predicated region
    $region2: #{tpu_custom_call.1} parent=1 // pred_check
      _
    $region3: #{tpu_custom_call.1} parent=1 // pred_check_branch
      %9 = sbr.rel (0) target = $region5
    $region4: #{tpu_custom_call.1} parent=1 // pred_region
      %11 = vsyncadd [#allocation4], 0
      %s13 = sshll.u32 %s0, 4
      %s14 = int_to_ptr.hbm [resolvable:$true] %s13
      %s15 = sshll.u32 [#allocation3], 4
      %s16 = int_to_ptr.vmem [resolvable:$true] %s15
      %18 = dma.hbm_to_vmem [thread:$0]  %s14, 256, %s16, [#allocation4]
    $region5: #{tpu_custom_call.1} parent=1 // pred_fallthru
      _
    // Predicated region
    $region6: #{tpu_custom_call.1} parent=1 // pred_check
      _
    $region7: #{tpu_custom_call.1} parent=1 // pred_check_branch
      %20 = sbr.rel (0) target = $region9
    $region8: #{tpu_custom_call.1} parent=1 // pred_region
      %22 = dma.done [#allocation4], 256
    $region9: #{tpu_custom_call.1} parent=1 // pred_fallthru
      _
    %p23 = scmp.eq.s32.totalorder 0, 0
    // Predicated region
    $region10: #{tpu_custom_call.1} parent=1 // pred_check
      %p24 = pneg %p23
    $region11: #{tpu_custom_call.1} parent=1 // pred_check_branch
      %26 = sbr.rel (%p24) target = $region13
    $region12: #{tpu_custom_call.1} parent=1 // pred_region
      %27 = vst [vmem:[#allocation2] sm:$0xff] 1.0
    $region13: #{tpu_custom_call.1} parent=1 // pred_fallthru
      _
    %v28 = vlaneseq
    %v29 = vand.u32 %v28, 127
    %v30 = vld [vmem:[#allocation2] sm:$0xff]
    %v31 = vld [vmem:[#allocation3] sm:$0xff]
    %32 = vrot.lane.b32.xlu0 %v31, 1
    %v33 = vpop.permute.xlu0 %32
    %vm34 = vcmp.ge.s32.totalorder %v29, 1
    %v35 = vsel %vm34, %v33, 1.0
    %v36 = vmul.f32 %v31, %v35
    %37 = vrot.lane.b32.xlu0 %v36, 2
    %v38 = vpop.permute.xlu0 %37
    %vm39 = vcmp.ge.s32.totalorder %v29, 2
    %v40 = vsel %vm39, %v38, 1.0
    %v41 = vmul.f32 %v36, %v40
    %42 = vrot.lane.b32.xlu0 %v41, 4
    %v43 = vpop.permute.xlu0 %42
    %vm44 = vcmp.ge.s32.totalorder %v29, 4
    %v45 = vsel %vm44, %v43, 1.0
    %v46 = vmul.f32 %v41, %v45
    %47 = vrot.lane.b32.xlu0 %v46, 8
    %v48 = vpop.permute.xlu0 %47
    %vm49 = vcmp.ge.s32.totalorder %v29, 8
    %v50 = vsel %vm49, %v48, 1.0
    %v51 = vmul.f32 %v46, %v50
    %52 = vrot.lane.b32.xlu0 %v51, 16
    %v53 = vpop.permute.xlu0 %52
    %vm54 = vcmp.ge.s32.totalorder %v29, 16
    %v55 = vsel %vm54, %v53, 1.0
    %v56 = vmul.f32 %v51, %v55
    %57 = vrot.lane.b32.xlu0 %v56, 32
    %v58 = vpop.permute.xlu0 %57
    %vm59 = vcmp.ge.s32.totalorder %v29, 32
    %v60 = vsel %vm59, %v58, 1.0
    %v61 = vmul.f32 %v56, %v60
    %62 = vrot.lane.b32.xlu0 %v61, 64
    %v63 = vpop.permute.xlu0 %62
    %vm64 = vcmp.ge.s32.totalorder %v29, 64
    %v65 = vsel %vm64, %v63, 1.0
    %v66 = vmul.f32 %v61, %v65
    %v67 = vmul.f32 %v66, %v30
    %68 = vst [vmem:[#allocation6] sm:$0xff] %v67
    %70 = vset.pattern.permute.xlu0 127
    %71 = vperm.xlu0 %70, %v67
    %v72 = vpop.permute.xlu0 %71
    %s74 = scalar_lea.vmem [#allocation3], 8
    %v75 = vld [vmem:[%s74] sm:$0xff]
    %76 = vrot.lane.b32.xlu0 %v75, 1
    %v77 = vpop.permute.xlu0 %76
    %v78 = vsel %vm34, %v77, 1.0
    %v79 = vmul.f32 %v75, %v78
    %80 = vrot.lane.b32.xlu0 %v79, 2
    %v81 = vpop.permute.xlu0 %80
    %v82 = vsel %vm39, %v81, 1.0
    %v83 = vmul.f32 %v79, %v82
    %84 = vrot.lane.b32.xlu0 %v83, 4
    %v85 = vpop.permute.xlu0 %84
    %v86 = vsel %vm44, %v85, 1.0
    %v87 = vmul.f32 %v83, %v86
    %88 = vrot.lane.b32.xlu0 %v87, 8
    %v89 = vpop.permute.xlu0 %88
    %v90 = vsel %vm49, %v89, 1.0
    %v91 = vmul.f32 %v87, %v90
    %92 = vrot.lane.b32.xlu0 %v91, 16
    %v93 = vpop.permute.xlu0 %92
    %v94 = vsel %vm54, %v93, 1.0
    %v95 = vmul.f32 %v91, %v94
    %96 = vrot.lane.b32.xlu0 %v95, 32
    %v97 = vpop.permute.xlu0 %96
    %v98 = vsel %vm59, %v97, 1.0
    %v99 = vmul.f32 %v95, %v98
    %100 = vrot.lane.b32.xlu0 %v99, 64
    %v101 = vpop.permute.xlu0 %100
    %v102 = vsel %vm64, %v101, 1.0
    %v103 = vmul.f32 %v99, %v102
    %v104 = vmul.f32 %v103, %v72
    %s105 = scalar_lea.vmem [#allocation6], 8
    %106 = vst [vmem:[%s105] sm:$0xff] %v104
    %108 = vset.pattern.permute.xlu0 127
    %109 = vperm.xlu0 %108, %v104
    %v110 = vpop.permute.xlu0 %109
    %112 = vst [vmem:[#allocation2] sm:$0xff] %v110
    // Predicated region
    $region14: #{tpu_custom_call.1} parent=1 // pred_check
      _
    $region15: #{tpu_custom_call.1} parent=1 // pred_check_branch
      %114 = sbr.rel (0) target = $region17
    $region16: #{tpu_custom_call.1} parent=1 // pred_region
      %116 = vsyncadd [#allocation5], 0
      %s118 = sshll.u32 [#allocation6], 4
      %s119 = int_to_ptr.vmem [resolvable:$true] %s118
      %s120 = sshll.u32 %s1, 4
      %s121 = int_to_ptr.hbm [resolvable:$true] %s120
      %123 = dma.vmem_to_hbm [thread:$0]  %s119, 256, %s121, [#allocation5]
    $region17: #{tpu_custom_call.1} parent=1 // pred_fallthru
      _
    // Predicated region
    $region18: #{tpu_custom_call.1} parent=1 // pred_check
      _
    $region19: #{tpu_custom_call.1} parent=1 // pred_check_branch
      %125 = sbr.rel (0) target = $region21
    $region20: #{tpu_custom_call.1} parent=1 // pred_region
      %127 = dma.done [#allocation5], 256
    $region21: #{tpu_custom_call.1} parent=1 // pred_fallthru
      _
    %128 = vsyncpa [#allocation4], 1
    %129 = vsyncpa [#allocation5], 1

</llo_original>
